<compile_context>
chip_gen: v7x
topology: tpu7x:2x2x1
jax: 0.10.0
libtpu: 0.0.40
codegen_flags: <defaults>
</compile_context>

<pallas_src>
import jax
import jax.numpy as jnp
from jax import lax
from jax.experimental import pallas as pl
from jax.experimental.pallas import tpu as pltpu

LANE = 128


def _sublane_multiple(dtype) -> int:
    # Sub-32-bit dtypes pack along sublanes: f32 -> 8, bf16 -> 16, int8 -> 32.
    return max(8, 32 // jnp.dtype(dtype).itemsize)


def _tpu_config():
    """Generation-aware (tile size, core split, scoped-VMEM cap) defaults."""
    kind = ""
    try:
        kind = jax.devices()[0].device_kind.lower()
    except Exception:
        pass
    if "v7" in kind or "tpu7" in kind:
        # 2 TensorCores / chip, only 64 MiB physical VMEM per TC.
        return dict(max_tile_rows=4096, ncores=2, vmem_cap=48 << 20)
    if "v6" in kind:
        return dict(max_tile_rows=4096, ncores=1, vmem_cap=96 << 20)
    if "v5e" in kind or "v5 lite" in kind or "v5lite" in kind:
        return dict(max_tile_rows=2048, ncores=1, vmem_cap=96 << 20)
    if "v5" in kind or "v4" in kind:
        # v4 / v5p expose a 2-TensorCore megacore per device.
        return dict(max_tile_rows=2048, ncores=2, vmem_cap=96 << 20)
    if "v2" in kind or "v3" in kind:
        return dict(max_tile_rows=512, ncores=1, vmem_cap=None)
    # Unknown device: conservative settings known to compile/run everywhere.
    return dict(max_tile_rows=1024, ncores=1, vmem_cap=None)


def _chunk_rows_for(tile_rows: int) -> int:
    # Largest chunk <= 512 rows that evenly divides the tile (tile_rows is
    # always a multiple of 8, so this terminates at 8 in the worst case).
    for c in (512, 256, 128, 64, 32, 16, 8):
        if tile_rows % c == 0:
            return c
    return tile_rows


def _partial_sums_jax(pred_f, gt_f):
    """A, B, C contributions of a (small) 1-D slice, in plain JAX."""
    p = pred_f.astype(jnp.float32)
    g = gt_f.astype(jnp.float32)
    sp_pos = jnp.logaddexp(0.0, p)      # softplus(p)
    sp_neg = jnp.logaddexp(0.0, -p)     # softplus(-p)
    return jnp.sum(g), jnp.sum(g * sp_neg), jnp.sum((1.0 - g) * sp_pos)


def _make_kernel(*, rows, tile_rows, chunk_rows, inner, needs_mask):
    n_chunks = tile_rows // chunk_rows
    unroll = max(1, min(4, n_chunks))

    def vreg_sum(v):
        # (chunk_rows, LANE) -> (8, LANE): split the sublane axis into whole
        # (8, 128) vreg tiles so the reduction is pure VPU adds (no XLU).
        return jnp.sum(v.reshape(chunk_rows // 8, 8, LANE), axis=0)

    def kernel(pred_ref, gt_ref, a_ref, b_ref, c_ref):
        # Accumulators are resident output blocks across the inner
        # ('arbitrary') reduction axis -> zero them on the first inner step.
        @pl.when(pl.program_id(1) == 0)
        def _():
            a_ref[...] = jnp.zeros_like(a_ref)
            b_ref[...] = jnp.zeros_like(b_ref)
            c_ref[...] = jnp.zeros_like(c_ref)

        # Logical tile index (the DMA block index is clamped in the index_map;
        # out-of-range rows are masked below).
        tile_idx = pl.program_id(0) * inner + pl.program_id(1)
        tile_start = tile_idx * tile_rows

        def accumulate(masked):
            def body(c, carry):
                acc_a, acc_b, acc_c = carry
                if n_chunks == 1:
                    r0 = 0
                    x = pred_ref[...].astype(jnp.float32)
                    y = gt_ref[...].astype(jnp.float32)
                else:
                    r0 = pl.multiple_of(c * chunk_rows, chunk_rows)
                    x = pred_ref[pl.ds(r0, chunk_rows), :].astype(jnp.float32)
                    y = gt_ref[pl.ds(r0, chunk_rows), :].astype(jnp.float32)
                if masked:
                    rid = tile_start + r0 + lax.broadcasted_iota(
                        jnp.int32, (chunk_rows, 1), 0)
                    valid = rid < rows
                    # pred=-100, gt=0 makes every partial-sum contribution of
                    # an out-of-range row exactly 0.
                    x = jnp.where(valid, x, -100.0)
                    y = jnp.where(valid, y, 0.0)
                # Numerically stable softplus computed once per element:
                #   sp_neg = softplus(-x),  sp_pos = softplus(x) = sp_neg + x.
                sp_neg = jnp.maximum(-x, 0.0) + jnp.log1p(jnp.exp(-jnp.abs(x)))
                sp_pos = sp_neg + x
                return (acc_a + vreg_sum(y),
                        acc_b + vreg_sum(y * sp_neg),
                        acc_c + vreg_sum((1.0 - y) * sp_pos))

            init = (jnp.zeros((8, LANE), jnp.float32),
                    jnp.zeros((8, LANE), jnp.float32),
                    jnp.zeros((8, LANE), jnp.float32))
            if n_chunks == 1:
                sa, sb, sc = body(0, init)
            else:
                sa, sb, sc = lax.fori_loop(0, n_chunks, body, init, unroll=unroll)
            a_ref[...] += sa[None]
            b_ref[...] += sb[None]
            c_ref[...] += sc[None]

        if needs_mask:
            # Only tiles that actually overrun `rows` (the partial last tile
            # and redundant clamped tiles from the core split) pay for the
            # row mask; full tiles take the unmasked fast path.
            overruns = tile_start + tile_rows > rows

            @pl.when(jnp.logical_not(overruns))
            def _():
                accumulate(masked=False)

            @pl.when(overruns)
            def _():
                accumulate(masked=True)
        else:
            accumulate(masked=False)

    return kernel


def my_wcploss1(pred, gt, *, _max_tile_rows=None):
    """Pallas TPU implementation of MyWcploss1.forward(pred, gt) -> scalar loss.

    `gt` may be bf16 / int8 (binary mask) to cut HBM traffic; cast happens
    in-kernel.  `_max_tile_rows` (testing hook) must be a multiple of 16.
    """
    assert pred.shape == gt.shape
    n = pred.size
    assert n > 0

    cfg = _tpu_config()
    max_tile_rows = _max_tile_rows or cfg["max_tile_rows"]

    pred_f = pred.reshape(-1)            # row-major flatten: free layout change
    gt_f = gt.reshape(-1)

    sub = max(_sublane_multiple(pred.dtype), _sublane_multiple(gt.dtype))
    slab = sub * LANE                    # elements per whole (sub, 128) slab
    n_tail = n % slab
    n_main = n - n_tail

    if n_main == 0:
        # The whole input is smaller than one slab: plain JAX is simpler and
        # faster than launching a kernel.
        A, B, C = _partial_sums_jax(pred_f, gt_f)
    else:
        rows = n_main // LANE            # multiple of `sub` (>= 8)
        pred2 = pred_f[:n_main].reshape(rows, LANE)
        gt2 = gt_f[:n_main].reshape(rows, LANE)

        tile_rows = min(max_tile_rows, rows)
        total_tiles = (rows + tile_rows - 1) // tile_rows
        ncores = min(cfg["ncores"], total_tiles)
        inner = (total_tiles + ncores - 1) // ncores
        # True whenever some grid step (partial last tile, or redundant clamped
        # tile from the core split) covers rows beyond `rows`.
        needs_mask = (ncores * inner * tile_rows) != rows
        chunk_rows = _chunk_rows_for(tile_rows)

        kernel = _make_kernel(rows=rows, tile_rows=tile_rows,
                              chunk_rows=chunk_rows, inner=inner,
                              needs_mask=needs_mask)

        def in_map(c, i):
            # Clamp so redundant steps (core split) re-read the last real tile;
            # their contribution is zeroed by the in-kernel row mask.
            return (jnp.minimum(c * inner + i, total_tiles - 1), 0)

        in_spec = pl.BlockSpec((tile_rows, LANE), in_map)
        acc_spec = pl.BlockSpec((1, 8, LANE), lambda c, i: (c, 0, 0))
        acc_shape = jax.ShapeDtypeStruct((ncores, 8, LANE), jnp.float32)

        compiler_kwargs = dict(dimension_semantics=("parallel", "arbitrary"))
        if cfg["vmem_cap"] is not None:
            # 2 double-buffered input tiles + chunk-bounded temporaries +
            # headroom, capped per generation (v7x: 64 MiB physical / TC).
            in_bytes = 2 * tile_rows * LANE * (
                jnp.dtype(pred.dtype).itemsize + jnp.dtype(gt.dtype).itemsize)
            vmem_limit = min(cfg["vmem_cap"],
                             max(32 << 20, in_bytes + (16 << 20)))
            compiler_kwargs["vmem_limit_bytes"] = int(vmem_limit)

        a_p, b_p, c_p = pl.pallas_call(
            kernel,
            out_shape=(acc_shape, acc_shape, acc_shape),
            grid_spec=pltpu.PrefetchScalarGridSpec(
                num_scalar_prefetch=0,
                grid=(ncores, inner),
                in_specs=[in_spec, in_spec],
                out_specs=(acc_spec, acc_spec, acc_spec),
            ),
            compiler_params=pltpu.CompilerParams(**compiler_kwargs),
        )(pred2, gt2)

        A = jnp.sum(a_p)   # sum(gt)
        B = jnp.sum(b_p)   # sum(gt * softplus(-pred))
        C = jnp.sum(c_p)   # sum((1 - gt) * softplus(pred))

        if n_tail:
            # Odd tail (< one slab): plain JAX instead of a wrapper-side
            # concatenate that would re-read and rewrite both full inputs.
            At, Bt, Ct = _partial_sums_jax(pred_f[n_main:], gt_f[n_main:])
            A, B, C = A + At, B + Bt, C + Ct

    eps = jnp.float32(1e-10)
    count_pos = A + eps
    count_neg = jnp.float32(n) - A
    beta = count_neg / count_pos
    beta_back = count_pos / (count_pos + count_neg)
    # mean of the pos_weight-ed BCE, scaled by beta_back (torch semantics).
    return beta_back * (beta * B + C) / jnp.float32(n)


def _reference(pred, gt):
    """Pure-JAX reference mirroring the PyTorch module."""
    pred = pred.astype(jnp.float32)
    gt = gt.astype(jnp.float32)
    eps = 1e-10
    count_pos = jnp.sum(gt) + eps
    count_neg = jnp.sum(1.0 - gt)
    beta = count_neg / count_pos
    beta_back = count_pos / (count_pos + count_neg)
    sp_pos = jnp.logaddexp(0.0, pred)
    sp_neg = jnp.logaddexp(0.0, -pred)
    per_elem = beta * gt * sp_neg + (1.0 - gt) * sp_pos
    return beta_back * jnp.mean(per_elem)


def _check(pred, gt, *, rtol, atol=1e-6, **kw):
    loss = my_wcploss1(pred, gt, **kw)
    jax.block_until_ready(loss)
    ref = _reference(pred, gt)
    assert jnp.allclose(loss, ref, rtol=rtol, atol=atol), (loss, ref)


if __name__ == "__main__":
    key = jax.random.PRNGKey(0)
    k = jax.random.split(key, 8)

    # 1) Primary small example consistent with the module: NCHW logits + gt.
    B, C, H, W = 2, 4, 16, 16
    pred = jax.random.normal(k[0], (B, C, H, W), dtype=jnp.float32)
    gt = (jax.random.uniform(k[1], (B, C, H, W)) > 0.7).astype(jnp.float32)
    _check(pred, gt, rtol=1e-5)

    # 2) Larger case: multi-chunk inner loop, odd tail handled in JAX, and a
    #    reduced-precision gt (bf16 binary mask) exercising mixed input dtypes.
    pred_b = jax.random.normal(k[2], (2, 4, 184, 184), dtype=jnp.float32)
    gt_b = (jax.random.uniform(k[3], (2, 4, 184, 184)) > 0.7).astype(jnp.bfloat16)
    _check(pred_b, gt_b, rtol=3e-5)

    # 3) Tiny odd size: aligned prefix is a single small tile + JAX tail.
    pred_c = jax.random.normal(k[4], (3, 5, 7, 11), dtype=jnp.float32)
    gt_c = (jax.random.uniform(k[5], (3, 5, 7, 11)) > 0.7).astype(jnp.float32)
    _check(pred_c, gt_c, rtol=3e-5)

    # 4) Forced small tiles: multi-tile grid with a masked partial last tile
    #    (plus a redundant clamped step when the core split is active) + tail.
    pred_d = jax.random.normal(k[6], (2, 3, 40, 32), dtype=jnp.float32)
    gt_d = (jax.random.uniform(k[7], (2, 3, 40, 32)) > 0.7).astype(jnp.float32)
    _check(pred_d, gt_d, rtol=3e-5, _max_tile_rows=16)

    print("KERNEL_OK")
</pallas_src>

<mosaic_0001>
module attributes {stable_mosaic.version = 11 : i64} {
  func.func @kernel(%arg0: i32, %arg1: i32, %arg2: memref<16x128xf32, #tpu.memory_space<vmem>>, %arg3: memref<16x128xf32, #tpu.memory_space<vmem>>, %arg4: memref<1x8x128xf32, #tpu.memory_space<vmem>>, %arg5: memref<1x8x128xf32, #tpu.memory_space<vmem>>, %arg6: memref<1x8x128xf32, #tpu.memory_space<vmem>>) attributes {dimension_semantics = [#tpu.dimension_semantics<parallel>, #tpu.dimension_semantics<arbitrary>], iteration_bounds = array<i64: 1, 1>, scalar_prefetch = 0 : i64, scratch_operands = 0 : i64, tpu.core_type = #tpu.core_type<tc>, window_params = [{transform_indices = @transform_0, window_bounds = array<i64: 16, 128>}, {transform_indices = @transform_1, window_bounds = array<i64: 16, 128>}, {transform_indices = @transform_2, window_bounds = array<i64: 1, 8, 128>}, {transform_indices = @transform_3, window_bounds = array<i64: 1, 8, 128>}, {transform_indices = @transform_4, window_bounds = array<i64: 1, 8, 128>}]} {
    %c0_i32 = arith.constant 0 : i32
    %0 = arith.cmpi eq, %arg1, %c0_i32 : i32
    %1 = arith.extui %0 : i1 to i32
    %c0_i32_0 = arith.constant 0 : i32
    %2 = arith.cmpi ne, %1, %c0_i32_0 : i32
    scf.if %2 {
      %cst_31 = arith.constant 0.000000e+00 : f32
      %44 = vector.broadcast %cst_31 : f32 to vector<1x8x128xf32>
      %c0_32 = arith.constant 0 : index
      %c0_33 = arith.constant 0 : index
      %c0_34 = arith.constant 0 : index
      %45 = vector.load %arg4[%c0_32, %c0_33, %c0_34] : memref<1x8x128xf32, #tpu.memory_space<vmem>>, vector<1x8x128xf32>
      tpu.vector_store %arg4[%c0_32, %c0_33, %c0_34], %44 {strides = array<i32>} : memref<1x8x128xf32, #tpu.memory_space<vmem>>, vector<1x8x128xf32>,
      %cst_35 = arith.constant 0.000000e+00 : f32
      %46 = vector.broadcast %cst_35 : f32 to vector<1x8x128xf32>
      %c0_36 = arith.constant 0 : index
      %c0_37 = arith.constant 0 : index
      %c0_38 = arith.constant 0 : index
      %47 = vector.load %arg5[%c0_36, %c0_37, %c0_38] : memref<1x8x128xf32, #tpu.memory_space<vmem>>, vector<1x8x128xf32>
      tpu.vector_store %arg5[%c0_36, %c0_37, %c0_38], %46 {strides = array<i32>} : memref<1x8x128xf32, #tpu.memory_space<vmem>>, vector<1x8x128xf32>,
      %cst_39 = arith.constant 0.000000e+00 : f32
      %48 = vector.broadcast %cst_39 : f32 to vector<1x8x128xf32>
      %c0_40 = arith.constant 0 : index
      %c0_41 = arith.constant 0 : index
      %c0_42 = arith.constant 0 : index
      %49 = vector.load %arg6[%c0_40, %c0_41, %c0_42] : memref<1x8x128xf32, #tpu.memory_space<vmem>>, vector<1x8x128xf32>
      tpu.vector_store %arg6[%c0_40, %c0_41, %c0_42], %48 {strides = array<i32>} : memref<1x8x128xf32, #tpu.memory_space<vmem>>, vector<1x8x128xf32>,
    } else {
    }
    %cst = arith.constant 0.000000e+00 : f32
    %3 = vector.broadcast %cst : f32 to vector<8x128xf32>
    %cst_1 = arith.constant 0.000000e+00 : f32
    %4 = vector.broadcast %cst_1 : f32 to vector<8x128xf32>
    %cst_2 = arith.constant 0.000000e+00 : f32
    %5 = vector.broadcast %cst_2 : f32 to vector<8x128xf32>
    %c0 = arith.constant 0 : index
    %c0_3 = arith.constant 0 : index
    %6 = vector.load %arg2[%c0, %c0_3] : memref<16x128xf32, #tpu.memory_space<vmem>>, vector<16x128xf32>
    %c0_4 = arith.constant 0 : index
    %c0_5 = arith.constant 0 : index
    %7 = vector.load %arg3[%c0_4, %c0_5] : memref<16x128xf32, #tpu.memory_space<vmem>>, vector<16x128xf32>
    %cst_6 = arith.constant 0.000000e+00 : f32
    %8 = vector.broadcast %cst_6 : f32 to vector<16x128xf32>
    %9 = arith.subf %8, %6 : vector<16x128xf32>
    %cst_7 = arith.constant 0.000000e+00 : f32
    %10 = vector.broadcast %cst_7 : f32 to vector<16x128xf32>
    %11 = arith.maximumf %9, %10 : vector<16x128xf32>
    %12 = math.absf %6 : vector<16x128xf32>
    %cst_8 = arith.constant 0.000000e+00 : f32
    %13 = vector.broadcast %cst_8 : f32 to vector<16x128xf32>
    %14 = arith.subf %13, %12 : vector<16x128xf32>
    %15 = math.exp %14 : vector<16x128xf32>
    %16 = math.log1p %15 : vector<16x128xf32>
    %17 = arith.addf %11, %16 : vector<16x128xf32>
    %18 = arith.addf %17, %6 : vector<16x128xf32>
    %19 = vector.shape_cast %7 : vector<16x128xf32> to vector<2x8x128xf32>
    %cst_9 = arith.constant dense<0.000000e+00> : vector<8x128xf32>
    %20 = vector.multi_reduction <add>, %19, %cst_9 [0] : vector<2x8x128xf32> to vector<8x128xf32>
    %21 = arith.addf %3, %20 : vector<8x128xf32>
    %22 = arith.mulf %7, %17 : vector<16x128xf32>
    %23 = vector.shape_cast %22 : vector<16x128xf32> to vector<2x8x128xf32>
    %cst_10 = arith.constant dense<0.000000e+00> : vector<8x128xf32>
    %24 = vector.multi_reduction <add>, %23, %cst_10 [0] : vector<2x8x128xf32> to vector<8x128xf32>
    %25 = arith.addf %4, %24 : vector<8x128xf32>
    %cst_11 = arith.constant 1.000000e+00 : f32
    %26 = vector.broadcast %cst_11 : f32 to vector<16x128xf32>
    %27 = arith.subf %26, %7 : vector<16x128xf32>
    %28 = arith.mulf %27, %18 : vector<16x128xf32>
    %29 = vector.shape_cast %28 : vector<16x128xf32> to vector<2x8x128xf32>
    %cst_12 = arith.constant dense<0.000000e+00> : vector<8x128xf32>
    %30 = vector.multi_reduction <add>, %29, %cst_12 [0] : vector<2x8x128xf32> to vector<8x128xf32>
    %31 = arith.addf %5, %30 : vector<8x128xf32>
    %c0_13 = arith.constant 0 : index
    %c0_14 = arith.constant 0 : index
    %c0_15 = arith.constant 0 : index
    %32 = vector.load %arg4[%c0_13, %c0_14, %c0_15] : memref<1x8x128xf32, #tpu.memory_space<vmem>>, vector<1x8x128xf32>
    %33 = vector.shape_cast %21 : vector<8x128xf32> to vector<1x8x128xf32>
    %34 = arith.addf %32, %33 : vector<1x8x128xf32>
    %c0_16 = arith.constant 0 : index
    %c0_17 = arith.constant 0 : index
    %c0_18 = arith.constant 0 : index
    %35 = vector.load %arg4[%c0_16, %c0_17, %c0_18] : memref<1x8x128xf32, #tpu.memory_space<vmem>>, vector<1x8x128xf32>
    tpu.vector_store %arg4[%c0_16, %c0_17, %c0_18], %34 {strides = array<i32>} : memref<1x8x128xf32, #tpu.memory_space<vmem>>, vector<1x8x128xf32>,
    %c0_19 = arith.constant 0 : index
    %c0_20 = arith.constant 0 : index
    %c0_21 = arith.constant 0 : index
    %36 = vector.load %arg5[%c0_19, %c0_20, %c0_21] : memref<1x8x128xf32, #tpu.memory_space<vmem>>, vector<1x8x128xf32>
    %37 = vector.shape_cast %25 : vector<8x128xf32> to vector<1x8x128xf32>
    %38 = arith.addf %36, %37 : vector<1x8x128xf32>
    %c0_22 = arith.constant 0 : index
    %c0_23 = arith.constant 0 : index
    %c0_24 = arith.constant 0 : index
    %39 = vector.load %arg5[%c0_22, %c0_23, %c0_24] : memref<1x8x128xf32, #tpu.memory_space<vmem>>, vector<1x8x128xf32>
    tpu.vector_store %arg5[%c0_22, %c0_23, %c0_24], %38 {strides = array<i32>} : memref<1x8x128xf32, #tpu.memory_space<vmem>>, vector<1x8x128xf32>,
    %c0_25 = arith.constant 0 : index
    %c0_26 = arith.constant 0 : index
    %c0_27 = arith.constant 0 : index
    %40 = vector.load %arg6[%c0_25, %c0_26, %c0_27] : memref<1x8x128xf32, #tpu.memory_space<vmem>>, vector<1x8x128xf32>
    %41 = vector.shape_cast %31 : vector<8x128xf32> to vector<1x8x128xf32>
    %42 = arith.addf %40, %41 : vector<1x8x128xf32>
    %c0_28 = arith.constant 0 : index
    %c0_29 = arith.constant 0 : index
    %c0_30 = arith.constant 0 : index
    %43 = vector.load %arg6[%c0_28, %c0_29, %c0_30] : memref<1x8x128xf32, #tpu.memory_space<vmem>>, vector<1x8x128xf32>
    tpu.vector_store %arg6[%c0_28, %c0_29, %c0_30], %42 {strides = array<i32>} : memref<1x8x128xf32, #tpu.memory_space<vmem>>, vector<1x8x128xf32>,
    return
  }
  func.func @transform_0(%arg0: i32, %arg1: i32) -> (i32, i32) {
    %c1_i32 = arith.constant 1 : i32
    %0 = arith.muli %arg0, %c1_i32 : i32
    %1 = arith.addi %0, %arg1 : i32
    %c0_i32 = arith.constant 0 : i32
    %2 = arith.minsi %1, %c0_i32 : i32
    %c0_i32_0 = arith.constant 0 : i32
    %c0_i32_1 = arith.constant 0 : i32
    return %2, %c0_i32_0 : i32, i32
  }
  func.func @transform_1(%arg0: i32, %arg1: i32) -> (i32, i32) {
    %c1_i32 = arith.constant 1 : i32
    %0 = arith.muli %arg0, %c1_i32 : i32
    %1 = arith.addi %0, %arg1 : i32
    %c0_i32 = arith.constant 0 : i32
    %2 = arith.minsi %1, %c0_i32 : i32
    %c0_i32_0 = arith.constant 0 : i32
    %c0_i32_1 = arith.constant 0 : i32
    return %2, %c0_i32_0 : i32, i32
  }
  func.func @transform_2(%arg0: i32, %arg1: i32) -> (i32, i32, i32) {
    %c0_i32 = arith.constant 0 : i32
    %c0_i32_0 = arith.constant 0 : i32
    %c0_i32_1 = arith.constant 0 : i32
    return %arg0, %c0_i32, %c0_i32_0 : i32, i32, i32
  }
  func.func @transform_3(%arg0: i32, %arg1: i32) -> (i32, i32, i32) {
    %c0_i32 = arith.constant 0 : i32
    %c0_i32_0 = arith.constant 0 : i32
    %c0_i32_1 = arith.constant 0 : i32
    return %arg0, %c0_i32, %c0_i32_0 : i32, i32, i32
  }
  func.func @transform_4(%arg0: i32, %arg1: i32) -> (i32, i32, i32) {
    %c0_i32 = arith.constant 0 : i32
    %c0_i32_0 = arith.constant 0 : i32
    %c0_i32_1 = arith.constant 0 : i32
    return %arg0, %c0_i32, %c0_i32_0 : i32, i32, i32
  }
}

</mosaic_0001>

<llo_original>
// kernel: tpu_custom_call.1
$region0: #{tpu_custom_call.1}
  #allocation0 [shape = 'u32[]', space=smem, size = 0x4, offset = 0x4, fixed_abs, tag = 'smem constant byte address 0x4 - core index']
  #allocation1 [shape = 'u32[144,128]{1,0:T(1,128)}', space=vmem, size = 0x12000, scoped, tag = 'internal scratch']
  %s0 = inlined_call_operand.hbm [shape: f32[16,128], index: 0, kind: input, shape index: {}]
  %s1 = inlined_call_operand.hbm [shape: f32[16,128], index: 1, kind: input, shape index: {}]
  %s2 = inlined_call_operand.hbm [shape: f32[1,8,128], index: 2, kind: output, shape index: {0}]
  %s3 = inlined_call_operand.hbm [shape: f32[1,8,128], index: 3, kind: output, shape index: {1}]
  %s4 = inlined_call_operand.hbm [shape: f32[1,8,128], index: 4, kind: output, shape index: {2}]
  %5 = xla_tuple %s2, %s3, %s4
  %s6 = sld [smem:[#allocation0]]
  $region46: #{tpu_custom_call.1} parent=0
    _
  %s8 = ssub.s32 1, %s6
  %s9 = scalar_select 0, %s8, %s6
  $region1: #{tpu_custom_call.1} parent=0
    #allocation2 [shape = 'u8[8192]{0}', space=vmem, size = 0x2000, scoped, tag = 'input window, operand 0, single buffered']
    #allocation3 [shape = 's32[1]{0}', space=sflag, size = 0x4, scoped, tag = 'scoped memory for tpu_custom_call.1']
    #allocation4 [shape = 's32[1]{0}', space=sflag, size = 0x4, scoped, tag = 'scoped memory for tpu_custom_call.1']
    #allocation5 [shape = 'u8[8192]{0}', space=vmem, size = 0x2000, scoped, tag = 'input window, operand 1, single buffered']
    #allocation6 [shape = 's32[1]{0}', space=sflag, size = 0x4, scoped, tag = 'scoped memory for tpu_custom_call.1']
    #allocation7 [shape = 'u8[4096]{0}', space=vmem, size = 0x1000, scoped, tag = 'output window, operand 0, single buffered']
    #allocation8 [shape = 'u8[4096]{0}', space=vmem, size = 0x1000, scoped, tag = 'output window, operand 1, single buffered']
    #allocation9 [shape = 's32[1]{0}', space=sflag, size = 0x4, scoped, tag = 'scoped memory for tpu_custom_call.1']
    #allocation10 [shape = 'u8[4096]{0}', space=vmem, size = 0x1000, scoped, tag = 'output window, operand 2, single buffered']
    %10 = vsyncpa [#allocation3], 0
    %11 = vsyncpa [#allocation6], 0
    %12 = vsyncpa [#allocation4], 0
    %13 = vsyncpa [#allocation9], 0
    // Predicated region
    $region2: #{tpu_custom_call.1} parent=1 // pred_check
      _
    $region3: #{tpu_custom_call.1} parent=1 // pred_check_branch
      %15 = sbr.rel (0) target = $region5
    $region4: #{tpu_custom_call.1} parent=1 // pred_region
      %s16 = sadd.s32 0, 0
      %p17 = scmp.lt.s32.totalorder %s16, 0
      %s18 = scalar_select %p17, %s16, 0
      %s19 = smul.u32 2, %s18
      %s21 = ssub.s32 256, 256
      %22 = vsyncadd [#allocation3], %s21
      %s23 = smul.addr %s19, 128
      %s24 = scalar_lea.hbm %s0, %s23
      %s25 = sshll.u32 [#allocation2], 4
      %s26 = int_to_ptr.vmem [resolvable:$true] %s25
      %31 = dma.hbm_to_vmem [thread:$0]  %s24, 256, %s26, [#allocation3], 128, 128, 8
    $region5: #{tpu_custom_call.1} parent=1 // pred_fallthru
      _
    // Predicated region
    $region6: #{tpu_custom_call.1} parent=1 // pred_check
      _
    $region7: #{tpu_custom_call.1} parent=1 // pred_check_branch
      %33 = sbr.rel (0) target = $region9
    $region8: #{tpu_custom_call.1} parent=1 // pred_region
      %s34 = sadd.s32 0, 0
      %p35 = scmp.lt.s32.totalorder %s34, 0
      %s36 = scalar_select %p35, %s34, 0
      %s37 = smul.u32 2, %s36
      %s39 = ssub.s32 256, 256
      %40 = vsyncadd [#allocation6], %s39
      %s41 = smul.addr %s37, 128
      %s42 = scalar_lea.hbm %s1, %s41
      %s43 = sshll.u32 [#allocation5], 4
      %s44 = int_to_ptr.vmem [resolvable:$true] %s43
      %49 = dma.hbm_to_vmem [thread:$0]  %s42, 256, %s44, [#allocation6], 128, 128, 8
    $region9: #{tpu_custom_call.1} parent=1 // pred_fallthru
      _
    // Predicated region
    $region10: #{tpu_custom_call.1} parent=1 // pred_check
      _
    $region11: #{tpu_custom_call.1} parent=1 // pred_check_branch
      %51 = sbr.rel (0) target = $region13
    $region12: #{tpu_custom_call.1} parent=1 // pred_region
      %52 = dma.done [#allocation3], 256
    $region13: #{tpu_custom_call.1} parent=1 // pred_fallthru
      _
    // Predicated region
    $region14: #{tpu_custom_call.1} parent=1 // pred_check
      _
    $region15: #{tpu_custom_call.1} parent=1 // pred_check_branch
      %54 = sbr.rel (0) target = $region17
    $region16: #{tpu_custom_call.1} parent=1 // pred_region
      %55 = dma.done [#allocation6], 256
    $region17: #{tpu_custom_call.1} parent=1 // pred_fallthru
      _
    %s56 = sadd.s32 0, 0
    %p57 = scmp.lt.s32.totalorder %s56, 0
    %s58 = scalar_select %p57, %s56, 0
    %s59 = smul.u32 2, %s58
    %s60 = sadd.s32 0, 0
    %p61 = scmp.lt.s32.totalorder %s60, 0
    %s62 = scalar_select %p61, %s60, 0
    %s63 = smul.u32 2, %s62
    %p64 = scmp.eq.s32.totalorder 0, 0
    // Predicated region
    $region18: #{tpu_custom_call.1} parent=1 // pred_check
      %p65 = pneg %p64
    $region19: #{tpu_custom_call.1} parent=1 // pred_check_branch
      %67 = sbr.rel (%p65) target = $region21
    $region20: #{tpu_custom_call.1} parent=1 // pred_region
      %68 = vst [vmem:[#allocation7] sm:$0xff] 0.0
      %69 = vst [vmem:[#allocation8] sm:$0xff] 0.0
      %70 = vst [vmem:[#allocation10] sm:$0xff] 0.0
    $region21: #{tpu_custom_call.1} parent=1 // pred_fallthru
      _
    %v71 = vld [vmem:[#allocation2] sm:$0xff]
    %v72 = vld [vmem:[#allocation2 + $0x8] sm:$0xff]
    %v73 = vld [vmem:[#allocation5] sm:$0xff]
    %v74 = vld [vmem:[#allocation5 + $0x8] sm:$0xff]
    %v75 = vsub.f32 0.0, %v71
    %v76 = vsub.f32 0.0, %v72
    %v77 = vmax.f32 %v75, 0.0
    %v78 = vmax.f32 %v76, 0.0
    %v79 = vand.u32 2147483647, %v71
    %v80 = vand.u32 2147483647, %v72
    %v81 = vsub.f32 0.0, %v79
    %v82 = vsub.f32 0.0, %v80
    %v83 = vmul.f32 %v81, 1.442695
    %v84 = vpow.pop %v83
    %v85 = vmul.f32 %v82, 1.442695
    %v86 = vpow.pop %v85
    %v87 = vadd.f32 %v84, 1.0
    %v88 = vlog2.pop %v87
    %v89 = vmul.f32 %v88, 0.6931472
    %v90 = vmul.f32 -0.5, %v84
    %v91 = vadd.f32 %v90, 1.0
    %v92 = vmul.f32 %v91, %v84
    %v93 = vand.u32 2147483647, %v84
    %vm94 = vcmp.lt.f32.partialorder %v93, 0.0004427343
    %v95 = vsel %vm94, %v92, %v89
    %v96 = vadd.f32 %v86, 1.0
    %v97 = vlog2.pop %v96
    %v98 = vmul.f32 %v97, 0.6931472
    %v99 = vmul.f32 -0.5, %v86
    %v100 = vadd.f32 %v99, 1.0
    %v101 = vmul.f32 %v100, %v86
    %v102 = vand.u32 2147483647, %v86
    %vm103 = vcmp.lt.f32.partialorder %v102, 0.0004427343
    %v104 = vsel %vm103, %v101, %v98
    %v105 = vadd.f32 %v77, %v95
    %v106 = vadd.f32 %v78, %v104
    %v107 = vadd.f32 %v105, %v71
    %v108 = vadd.f32 %v106, %v72
    %v109 = vadd.f32 %v73, %v74
    %v110 = vadd.f32 %v109, 0.0
    %v111 = vmul.f32 %v73, %v105
    %v112 = vmul.f32 %v74, %v106
    %v113 = vadd.f32 %v111, %v112
    %v114 = vadd.f32 %v113, 0.0
    %v115 = vsub.f32 1.0, %v73
    %v116 = vsub.f32 1.0, %v74
    %v117 = vmul.f32 %v115, %v107
    %v118 = vmul.f32 %v116, %v108
    %v119 = vadd.f32 %v117, %v118
    %v120 = vadd.f32 %v119, 0.0
    %v121 = vld [vmem:[#allocation7] sm:$0xff]
    %v122 = vadd.f32 %v121, %v110
    %123 = vst [vmem:[#allocation7] sm:$0xff] %v122
    %v124 = vld [vmem:[#allocation8] sm:$0xff]
    %v125 = vadd.f32 %v124, %v114
    %126 = vst [vmem:[#allocation8] sm:$0xff] %v125
    %v127 = vld [vmem:[#allocation10] sm:$0xff]
    %v128 = vadd.f32 %v127, %v120
    %129 = vst [vmem:[#allocation10] sm:$0xff] %v128
    // Predicated region
    $region22: #{tpu_custom_call.1} parent=1 // pred_check
      _
    $region23: #{tpu_custom_call.1} parent=1 // pred_check_branch
      %131 = sbr.rel (0) target = $region25
    $region24: #{tpu_custom_call.1} parent=1 // pred_region
      %s133 = ssub.s32 128, 128
      %134 = vsyncadd [#allocation4], %s133
      %s136 = sshll.u32 [#allocation7], 4
      %s137 = int_to_ptr.vmem [resolvable:$true] %s136
      %139 = dma.vmem_to_hbm [thread:$0]  %s137, 128, %s2, [#allocation4]
    $region25: #{tpu_custom_call.1} parent=1 // pred_fallthru
      _
    // Predicated region
    $region26: #{tpu_custom_call.1} parent=1 // pred_check
      _
    $region27: #{tpu_custom_call.1} parent=1 // pred_check_branch
      %141 = sbr.rel (0) target = $region29
    $region28: #{tpu_custom_call.1} parent=1 // pred_region
      %s143 = ssub.s32 128, 128
      %144 = vsyncadd [#allocation9], %s143
      %s146 = sshll.u32 [#allocation8], 4
      %s147 = int_to_ptr.vmem [resolvable:$true] %s146
      %149 = dma.vmem_to_hbm [thread:$0]  %s147, 128, %s3, [#allocation9]
    $region29: #{tpu_custom_call.1} parent=1 // pred_fallthru
      _
    // Predicated region
    $region30: #{tpu_custom_call.1} parent=1 // pred_check
      _
    $region31: #{tpu_custom_call.1} parent=1 // pred_check_branch
      %151 = sbr.rel (0) target = $region33
    $region32: #{tpu_custom_call.1} parent=1 // pred_region
      %s153 = ssub.s32 128, 128
      %154 = vsyncadd [#allocation9], %s153
      %s156 = sshll.u32 [#allocation10], 4
      %s157 = int_to_ptr.vmem [resolvable:$true] %s156
      %159 = dma.vmem_to_hbm [thread:$0]  %s157, 128, %s4, [#allocation9]
    $region33: #{tpu_custom_call.1} parent=1 // pred_fallthru
      _
    // Predicated region
    $region34: #{tpu_custom_call.1} parent=1 // pred_check
      _
    $region35: #{tpu_custom_call.1} parent=1 // pred_check_branch
      %161 = sbr.rel (0) target = $region37
    $region36: #{tpu_custom_call.1} parent=1 // pred_region
      %162 = dma.done [#allocation4], 128
    $region37: #{tpu_custom_call.1} parent=1 // pred_fallthru
      _
    // Predicated region
    $region38: #{tpu_custom_call.1} parent=1 // pred_check
      _
    $region39: #{tpu_custom_call.1} parent=1 // pred_check_branch
      %164 = sbr.rel (0) target = $region41
    $region40: #{tpu_custom_call.1} parent=1 // pred_region
      %165 = dma.done [#allocation9], 128
    $region41: #{tpu_custom_call.1} parent=1 // pred_fallthru
      _
    // Predicated region
    $region42: #{tpu_custom_call.1} parent=1 // pred_check
      _
    $region43: #{tpu_custom_call.1} parent=1 // pred_check_branch
      %167 = sbr.rel (0) target = $region45
    $region44: #{tpu_custom_call.1} parent=1 // pred_region
      %168 = dma.done [#allocation9], 128
    $region45: #{tpu_custom_call.1} parent=1 // pred_fallthru
      _
    %169 = vsyncpa [#allocation3], 1
    %170 = vsyncpa [#allocation6], 1
    %171 = vsyncpa [#allocation4], 1
    %172 = vsyncpa [#allocation9], 1

</llo_original>
